<compile_context>
chip_gen: v5e
topology: v5e:2x2
jax: 0.10.0
libtpu: 0.0.40
codegen_flags: <defaults>
</compile_context>

<pallas_src>
import jax
import jax.numpy as jnp
from jax import lax
from jax.experimental import pallas as pl
from jax.experimental.pallas import tpu as pltpu


def _choose_tile_rows(H, W):
    # Target ~2 MiB for the 3-channel f32 block: double-buffered in+out plus
    # elementwise temporaries stay well under v7x's 64 MiB VMEM while each grid
    # step still amortizes the ~0.35us per-step overhead.
    target = (2 * 1024 * 1024) // (3 * 4 * max(W, 1))
    target = max(8, min(512, (target // 8) * 8))
    return H if H <= target else target


def _make_kernel(H, TH, W, HB):
    def kernel(x_ref, top_ref, bot_ref, o_ref):
        # x_ref   (1, 3, TH, W): tile rows [h0, h0+TH) of channels 0..2
        # top_ref (1, 3, HB, W): HB-row block whose LAST row is global row h0-1
        # bot_ref (1, 3, HB, W): HB-row block whose FIRST row is global row h0+TH
        # o_ref   (1, 3, TH, W): float32 gradient magnitude
        h_idx = pl.program_id(1)
        h0 = h_idx * TH
        local_row = lax.broadcasted_iota(jnp.int32, (TH, 1), 0)
        # Zero the "below" neighbour at the image's last row (also covers the
        # ragged last tile, where that row may be interior to the block).
        has_below = (h0 + local_row) < (H - 1)
        has_top_halo = h_idx > 0  # global row 0 only ever sits in tile 0, local row 0

        zc_big = jnp.zeros((TH, 1), jnp.float32)
        zc_one = jnp.zeros((1, 1), jnp.float32)

        def smooth_diff(z, zc):
            # s = x[j-1] + 2 x[j] + x[j+1],  d = x[j+1] - x[j-1],
            # with zero padding at the image's left/right edges.
            if W > 1:
                zl = jnp.concatenate([zc, z[:, : W - 1]], axis=1)
                zr = jnp.concatenate([z[:, 1:], zc], axis=1)
            else:
                zl = jnp.zeros_like(z)
                zr = jnp.zeros_like(z)
            return (zl + zr) + (z + z), zr - zl

        for c in range(3):  # 3 channels fused into one grid step
            x = x_ref[0, c].astype(jnp.float32)                        # (TH, W)
            top = top_ref[0, c, HB - 1:HB, :].astype(jnp.float32)      # (1, W)
            bot = bot_ref[0, c, 0:1, :].astype(jnp.float32)            # (1, W)
            top = jnp.where(has_top_halo, top, 0.0)  # zero above image row 0

            s, d = smooth_diff(x, zc_big)
            st, dt = smooth_diff(top, zc_one)
            sb, db = smooth_diff(bot, zc_one)

            if TH > 1:
                s_up = jnp.concatenate([st, s[: TH - 1, :]], axis=0)   # s(row-1)
                d_up = jnp.concatenate([dt, d[: TH - 1, :]], axis=0)
                s_dn = jnp.concatenate([s[1:, :], sb], axis=0)         # s(row+1)
                d_dn = jnp.concatenate([d[1:, :], db], axis=0)
            else:
                s_up, d_up, s_dn, d_dn = st, dt, sb, db
            s_dn = jnp.where(has_below, s_dn, 0.0)
            d_dn = jnp.where(has_below, d_dn, 0.0)

            gv = s_dn - s_up                      # vertical Sobel (kernel_v)
            gh = (d_up + d_dn) + (d + d)          # horizontal Sobel (kernel_h)
            o_ref[0, c] = jnp.sqrt(gv * gv + gh * gh + 1e-6)

    return kernel


def get_gradient_nopadding(x, tile_rows=None):
    """x: (B, C>=3, H, W) -> (B, 3, H, W) float32 Sobel gradient magnitude."""
    B, C, H, W = x.shape
    assert C >= 3, "module reads channels 0, 1, 2"

    if tile_rows is None:
        tile_rows = _choose_tile_rows(H, W)
    TH = int(tile_rows)
    if TH >= H or H <= 8:
        TH = H                        # single tile: full-dim block, no alignment rule
    else:
        TH = max(8, (TH // 8) * 8)    # tiled: sublane dim must be a multiple of 8
    NT = pl.cdiv(H, TH)               # ragged last tile is fine (Pallas clips the DMA)
    HB = 8 if H >= 8 else H           # halo-row block height
    NHB = pl.cdiv(H, HB)
    BPT = max(TH // HB, 1)            # halo blocks per tile (exact when tiling)

    isz = x.dtype.itemsize
    in_bytes = 3 * TH * W * isz + 2 * 3 * HB * W * isz
    out_bytes = 3 * TH * W * 4
    plane = TH * W * 4
    # double-buffered in+out blocks plus headroom for elementwise temporaries
    vmem_limit = int(min(max(2 * (in_bytes + out_bytes) + 12 * plane, 4 << 20), 40 << 20))

    kernel = _make_kernel(H, TH, W, HB)
    main_map = lambda b, h: (b, 0, h, 0)
    top_map = lambda b, h: (b, 0, jnp.maximum(h * BPT - 1, 0), 0)
    bot_map = lambda b, h: (b, 0, jnp.minimum((h + 1) * BPT, NHB - 1), 0)

    return pl.pallas_call(
        kernel,
        out_shape=jax.ShapeDtypeStruct((B, 3, H, W), jnp.float32),
        grid_spec=pltpu.PrefetchScalarGridSpec(
            num_scalar_prefetch=0,
            grid=(B, NT),
            in_specs=[
                pl.BlockSpec((1, 3, TH, W), main_map),   # main tile
                pl.BlockSpec((1, 3, HB, W), top_map),    # row-above halo view of x
                pl.BlockSpec((1, 3, HB, W), bot_map),    # row-below halo view of x
            ],
            out_specs=pl.BlockSpec((1, 3, TH, W), main_map),
        ),
        compiler_params=pltpu.CompilerParams(
            dimension_semantics=("parallel", "parallel"),
            vmem_limit_bytes=vmem_limit),
    )(x, x, x)


def _reference(x):
    """Plain-JAX reference (zero-padded Sobel, same math as the PyTorch module)."""
    B, C, H, W = x.shape
    kv = jnp.array([[-1., -2., -1.], [0., 0., 0.], [1., 2., 1.]], jnp.float32)
    kh = jnp.array([[-1., 0., 1.], [-2., 0., 2.], [-1., 0., 1.]], jnp.float32)
    outs = []
    for c in range(3):
        xp = jnp.pad(x[:, c].astype(jnp.float32), ((0, 0), (1, 1), (1, 1)))
        gv = jnp.zeros((B, H, W), jnp.float32)
        gh = jnp.zeros((B, H, W), jnp.float32)
        for a in range(3):
            for b in range(3):
                sl = xp[:, a:a + H, b:b + W]
                gv = gv + kv[a, b] * sl
                gh = gh + kh[a, b] * sl
        outs.append(jnp.sqrt(gv * gv + gh * gh + 1e-6))
    return jnp.stack(outs, axis=1)


if __name__ == "__main__":
    key0, key1 = jax.random.split(jax.random.PRNGKey(0))

    # Main test shape from the module spec.
    x = jax.random.normal(key0, (2, 4, 16, 16), dtype=jnp.float32)
    out = jax.block_until_ready(get_gradient_nopadding(x))
    ref = _reference(x)
    assert out.shape == (2, 3, 16, 16)
    assert jnp.allclose(out, ref, atol=1e-5, rtol=1e-5), float(
        jnp.max(jnp.abs(out - ref)))

    # Exercise the H-tiled path: multiple tiles, halo stitching, ragged last tile.
    x2 = jax.random.normal(key1, (1, 3, 40, 24), dtype=jnp.float32)
    out2 = jax.block_until_ready(get_gradient_nopadding(x2, tile_rows=16))
    ref2 = _reference(x2)
    assert jnp.allclose(out2, ref2, atol=1e-5, rtol=1e-5), float(
        jnp.max(jnp.abs(out2 - ref2)))

    print("KERNEL_OK")
</pallas_src>

<mosaic_0001>
module attributes {stable_mosaic.version = 11 : i64} {
  func.func @kernel(%arg0: i32, %arg1: i32, %arg2: memref<1x3x16x16xf32, #tpu.memory_space<vmem>>, %arg3: memref<1x3x8x16xf32, #tpu.memory_space<vmem>>, %arg4: memref<1x3x8x16xf32, #tpu.memory_space<vmem>>, %arg5: memref<1x3x16x16xf32, #tpu.memory_space<vmem>>) attributes {dimension_semantics = [#tpu.dimension_semantics<parallel>, #tpu.dimension_semantics<parallel>], iteration_bounds = array<i64: 2, 1>, scalar_prefetch = 0 : i64, scratch_operands = 0 : i64, tpu.core_type = #tpu.core_type<tc>, window_params = [{transform_indices = @transform_0, window_bounds = array<i64: 1, 3, 16, 16>}, {transform_indices = @transform_1, window_bounds = array<i64: 1, 3, 8, 16>}, {transform_indices = @transform_2, window_bounds = array<i64: 1, 3, 8, 16>}, {transform_indices = @transform_3, window_bounds = array<i64: 1, 3, 16, 16>}]} {
    %c16_i32 = arith.constant 16 : i32
    %0 = arith.muli %arg1, %c16_i32 : i32
    %1 = tpu.iota {dimensions = array<i32: 0>} : vector<16x1xi32>
    %2 = vector.broadcast %0 : i32 to vector<16x1xi32>
    %3 = arith.addi %2, %1 : vector<16x1xi32>
    %c15_i32 = arith.constant 15 : i32
    %4 = vector.broadcast %c15_i32 : i32 to vector<16x1xi32>
    %5 = arith.cmpi slt, %3, %4 : vector<16x1xi32>
    %c0_i32 = arith.constant 0 : i32
    %6 = arith.cmpi sgt, %arg1, %c0_i32 : i32
    %cst = arith.constant 0.000000e+00 : f32
    %7 = vector.broadcast %cst : f32 to vector<16x1xf32>
    %cst_0 = arith.constant 0.000000e+00 : f32
    %8 = vector.broadcast %cst_0 : f32 to vector<1x1xf32>
    %c0 = arith.constant 0 : index
    %c0_1 = arith.constant 0 : index
    %c0_2 = arith.constant 0 : index
    %c0_3 = arith.constant 0 : index
    %9 = vector.load %arg2[%c0, %c0_1, %c0_2, %c0_3] : memref<1x3x16x16xf32, #tpu.memory_space<vmem>>, vector<1x1x16x16xf32>
    %10 = vector.shape_cast %9 : vector<1x1x16x16xf32> to vector<16x16xf32>
    %c0_4 = arith.constant 0 : index
    %c0_5 = arith.constant 0 : index
    %c7 = arith.constant 7 : index
    %c0_6 = arith.constant 0 : index
    %11 = vector.load %arg3[%c0_4, %c0_5, %c7, %c0_6] : memref<1x3x8x16xf32, #tpu.memory_space<vmem>>, vector<1x1x1x16xf32>
    %12 = vector.shape_cast %11 : vector<1x1x1x16xf32> to vector<1x16xf32>
    %c0_7 = arith.constant 0 : index
    %c0_8 = arith.constant 0 : index
    %c0_9 = arith.constant 0 : index
    %c0_10 = arith.constant 0 : index
    %13 = vector.load %arg4[%c0_7, %c0_8, %c0_9, %c0_10] : memref<1x3x8x16xf32, #tpu.memory_space<vmem>>, vector<1x1x1x16xf32>
    %14 = vector.shape_cast %13 : vector<1x1x1x16xf32> to vector<1x16xf32>
    %cst_11 = arith.constant 0.000000e+00 : f32
    %15 = vector.broadcast %cst_11 : f32 to vector<1x16xf32>
    %16 = arith.select %6, %12, %15 : vector<1x16xf32>
    %17 = vector.extract_strided_slice %10 {offsets = [0, 0], sizes = [16, 15], strides = [1, 1]} : vector<16x16xf32> to vector<16x15xf32>
    %18 = tpu.concatenate %7, %17 in 1 : vector<16x1xf32>, vector<16x15xf32> -> vector<16x16xf32>
    %19 = vector.extract_strided_slice %10 {offsets = [0, 1], sizes = [16, 15], strides = [1, 1]} : vector<16x16xf32> to vector<16x15xf32>
    %20 = tpu.concatenate %19, %7 in 1 : vector<16x15xf32>, vector<16x1xf32> -> vector<16x16xf32>
    %21 = arith.addf %18, %20 : vector<16x16xf32>
    %22 = arith.addf %10, %10 : vector<16x16xf32>
    %23 = arith.addf %21, %22 : vector<16x16xf32>
    %24 = arith.subf %20, %18 : vector<16x16xf32>
    %25 = vector.extract_strided_slice %16 {offsets = [0, 0], sizes = [1, 15], strides = [1, 1]} : vector<1x16xf32> to vector<1x15xf32>
    %26 = tpu.concatenate %8, %25 in 1 : vector<1x1xf32>, vector<1x15xf32> -> vector<1x16xf32>
    %27 = vector.extract_strided_slice %16 {offsets = [0, 1], sizes = [1, 15], strides = [1, 1]} : vector<1x16xf32> to vector<1x15xf32>
    %28 = tpu.concatenate %27, %8 in 1 : vector<1x15xf32>, vector<1x1xf32> -> vector<1x16xf32>
    %29 = arith.addf %26, %28 : vector<1x16xf32>
    %30 = arith.addf %16, %16 : vector<1x16xf32>
    %31 = arith.addf %29, %30 : vector<1x16xf32>
    %32 = arith.subf %28, %26 : vector<1x16xf32>
    %33 = vector.extract_strided_slice %14 {offsets = [0, 0], sizes = [1, 15], strides = [1, 1]} : vector<1x16xf32> to vector<1x15xf32>
    %34 = tpu.concatenate %8, %33 in 1 : vector<1x1xf32>, vector<1x15xf32> -> vector<1x16xf32>
    %35 = vector.extract_strided_slice %14 {offsets = [0, 1], sizes = [1, 15], strides = [1, 1]} : vector<1x16xf32> to vector<1x15xf32>
    %36 = tpu.concatenate %35, %8 in 1 : vector<1x15xf32>, vector<1x1xf32> -> vector<1x16xf32>
    %37 = arith.addf %34, %36 : vector<1x16xf32>
    %38 = arith.addf %14, %14 : vector<1x16xf32>
    %39 = arith.addf %37, %38 : vector<1x16xf32>
    %40 = arith.subf %36, %34 : vector<1x16xf32>
    %41 = vector.extract_strided_slice %23 {offsets = [0, 0], sizes = [15, 16], strides = [1, 1]} : vector<16x16xf32> to vector<15x16xf32>
    %42 = tpu.concatenate %31, %41 in 0 : vector<1x16xf32>, vector<15x16xf32> -> vector<16x16xf32>
    %43 = vector.extract_strided_slice %24 {offsets = [0, 0], sizes = [15, 16], strides = [1, 1]} : vector<16x16xf32> to vector<15x16xf32>
    %44 = tpu.concatenate %32, %43 in 0 : vector<1x16xf32>, vector<15x16xf32> -> vector<16x16xf32>
    %45 = vector.extract_strided_slice %23 {offsets = [1, 0], sizes = [15, 16], strides = [1, 1]} : vector<16x16xf32> to vector<15x16xf32>
    %46 = tpu.concatenate %45, %39 in 0 : vector<15x16xf32>, vector<1x16xf32> -> vector<16x16xf32>
    %47 = vector.extract_strided_slice %24 {offsets = [1, 0], sizes = [15, 16], strides = [1, 1]} : vector<16x16xf32> to vector<15x16xf32>
    %48 = tpu.concatenate %47, %40 in 0 : vector<15x16xf32>, vector<1x16xf32> -> vector<16x16xf32>
    %cst_12 = arith.constant 0.000000e+00 : f32
    %49 = vector.shape_cast %5 : vector<16x1xi1> to vector<16x1xi1>
    %50 = vector.broadcast %49 : vector<16x1xi1> to vector<16x16xi1>
    %51 = vector.broadcast %cst_12 : f32 to vector<16x16xf32>
    %52 = arith.select %50, %46, %51 : vector<16x16xi1>, vector<16x16xf32>
    %cst_13 = arith.constant 0.000000e+00 : f32
    %53 = vector.shape_cast %5 : vector<16x1xi1> to vector<16x1xi1>
    %54 = vector.broadcast %53 : vector<16x1xi1> to vector<16x16xi1>
    %55 = vector.broadcast %cst_13 : f32 to vector<16x16xf32>
    %56 = arith.select %54, %48, %55 : vector<16x16xi1>, vector<16x16xf32>
    %57 = arith.subf %52, %42 : vector<16x16xf32>
    %58 = arith.addf %44, %56 : vector<16x16xf32>
    %59 = arith.addf %24, %24 : vector<16x16xf32>
    %60 = arith.addf %58, %59 : vector<16x16xf32>
    %61 = arith.mulf %57, %57 : vector<16x16xf32>
    %62 = arith.mulf %60, %60 : vector<16x16xf32>
    %63 = arith.addf %61, %62 : vector<16x16xf32>
    %cst_14 = arith.constant 9.99999997E-7 : f32
    %64 = vector.broadcast %cst_14 : f32 to vector<16x16xf32>
    %65 = arith.addf %63, %64 : vector<16x16xf32>
    %66 = math.sqrt %65 : vector<16x16xf32>
    %c0_15 = arith.constant 0 : index
    %c0_16 = arith.constant 0 : index
    %c0_17 = arith.constant 0 : index
    %c0_18 = arith.constant 0 : index
    %67 = vector.load %arg5[%c0_15, %c0_16, %c0_17, %c0_18] : memref<1x3x16x16xf32, #tpu.memory_space<vmem>>, vector<1x1x16x16xf32>
    %68 = vector.shape_cast %67 : vector<1x1x16x16xf32> to vector<16x16xf32>
    %69 = vector.shape_cast %66 : vector<16x16xf32> to vector<1x1x16x16xf32>
    tpu.vector_store %arg5[%c0_15, %c0_16, %c0_17, %c0_18], %69 {strides = array<i32>} : memref<1x3x16x16xf32, #tpu.memory_space<vmem>>, vector<1x1x16x16xf32>,
    %c0_19 = arith.constant 0 : index
    %c1 = arith.constant 1 : index
    %c0_20 = arith.constant 0 : index
    %c0_21 = arith.constant 0 : index
    %70 = vector.load %arg2[%c0_19, %c1, %c0_20, %c0_21] : memref<1x3x16x16xf32, #tpu.memory_space<vmem>>, vector<1x1x16x16xf32>
    %71 = vector.shape_cast %70 : vector<1x1x16x16xf32> to vector<16x16xf32>
    %c0_22 = arith.constant 0 : index
    %c1_23 = arith.constant 1 : index
    %c7_24 = arith.constant 7 : index
    %c0_25 = arith.constant 0 : index
    %72 = vector.load %arg3[%c0_22, %c1_23, %c7_24, %c0_25] : memref<1x3x8x16xf32, #tpu.memory_space<vmem>>, vector<1x1x1x16xf32>
    %73 = vector.shape_cast %72 : vector<1x1x1x16xf32> to vector<1x16xf32>
    %c0_26 = arith.constant 0 : index
    %c1_27 = arith.constant 1 : index
    %c0_28 = arith.constant 0 : index
    %c0_29 = arith.constant 0 : index
    %74 = vector.load %arg4[%c0_26, %c1_27, %c0_28, %c0_29] : memref<1x3x8x16xf32, #tpu.memory_space<vmem>>, vector<1x1x1x16xf32>
    %75 = vector.shape_cast %74 : vector<1x1x1x16xf32> to vector<1x16xf32>
    %cst_30 = arith.constant 0.000000e+00 : f32
    %76 = vector.broadcast %cst_30 : f32 to vector<1x16xf32>
    %77 = arith.select %6, %73, %76 : vector<1x16xf32>
    %78 = vector.extract_strided_slice %71 {offsets = [0, 0], sizes = [16, 15], strides = [1, 1]} : vector<16x16xf32> to vector<16x15xf32>
    %79 = tpu.concatenate %7, %78 in 1 : vector<16x1xf32>, vector<16x15xf32> -> vector<16x16xf32>
    %80 = vector.extract_strided_slice %71 {offsets = [0, 1], sizes = [16, 15], strides = [1, 1]} : vector<16x16xf32> to vector<16x15xf32>
    %81 = tpu.concatenate %80, %7 in 1 : vector<16x15xf32>, vector<16x1xf32> -> vector<16x16xf32>
    %82 = arith.addf %79, %81 : vector<16x16xf32>
    %83 = arith.addf %71, %71 : vector<16x16xf32>
    %84 = arith.addf %82, %83 : vector<16x16xf32>
    %85 = arith.subf %81, %79 : vector<16x16xf32>
    %86 = vector.extract_strided_slice %77 {offsets = [0, 0], sizes = [1, 15], strides = [1, 1]} : vector<1x16xf32> to vector<1x15xf32>
    %87 = tpu.concatenate %8, %86 in 1 : vector<1x1xf32>, vector<1x15xf32> -> vector<1x16xf32>
    %88 = vector.extract_strided_slice %77 {offsets = [0, 1], sizes = [1, 15], strides = [1, 1]} : vector<1x16xf32> to vector<1x15xf32>
    %89 = tpu.concatenate %88, %8 in 1 : vector<1x15xf32>, vector<1x1xf32> -> vector<1x16xf32>
    %90 = arith.addf %87, %89 : vector<1x16xf32>
    %91 = arith.addf %77, %77 : vector<1x16xf32>
    %92 = arith.addf %90, %91 : vector<1x16xf32>
    %93 = arith.subf %89, %87 : vector<1x16xf32>
    %94 = vector.extract_strided_slice %75 {offsets = [0, 0], sizes = [1, 15], strides = [1, 1]} : vector<1x16xf32> to vector<1x15xf32>
    %95 = tpu.concatenate %8, %94 in 1 : vector<1x1xf32>, vector<1x15xf32> -> vector<1x16xf32>
    %96 = vector.extract_strided_slice %75 {offsets = [0, 1], sizes = [1, 15], strides = [1, 1]} : vector<1x16xf32> to vector<1x15xf32>
    %97 = tpu.concatenate %96, %8 in 1 : vector<1x15xf32>, vector<1x1xf32> -> vector<1x16xf32>
    %98 = arith.addf %95, %97 : vector<1x16xf32>
    %99 = arith.addf %75, %75 : vector<1x16xf32>
    %100 = arith.addf %98, %99 : vector<1x16xf32>
    %101 = arith.subf %97, %95 : vector<1x16xf32>
    %102 = vector.extract_strided_slice %84 {offsets = [0, 0], sizes = [15, 16], strides = [1, 1]} : vector<16x16xf32> to vector<15x16xf32>
    %103 = tpu.concatenate %92, %102 in 0 : vector<1x16xf32>, vector<15x16xf32> -> vector<16x16xf32>
    %104 = vector.extract_strided_slice %85 {offsets = [0, 0], sizes = [15, 16], strides = [1, 1]} : vector<16x16xf32> to vector<15x16xf32>
    %105 = tpu.concatenate %93, %104 in 0 : vector<1x16xf32>, vector<15x16xf32> -> vector<16x16xf32>
    %106 = vector.extract_strided_slice %84 {offsets = [1, 0], sizes = [15, 16], strides = [1, 1]} : vector<16x16xf32> to vector<15x16xf32>
    %107 = tpu.concatenate %106, %100 in 0 : vector<15x16xf32>, vector<1x16xf32> -> vector<16x16xf32>
    %108 = vector.extract_strided_slice %85 {offsets = [1, 0], sizes = [15, 16], strides = [1, 1]} : vector<16x16xf32> to vector<15x16xf32>
    %109 = tpu.concatenate %108, %101 in 0 : vector<15x16xf32>, vector<1x16xf32> -> vector<16x16xf32>
    %cst_31 = arith.constant 0.000000e+00 : f32
    %110 = vector.shape_cast %5 : vector<16x1xi1> to vector<16x1xi1>
    %111 = vector.broadcast %110 : vector<16x1xi1> to vector<16x16xi1>
    %112 = vector.broadcast %cst_31 : f32 to vector<16x16xf32>
    %113 = arith.select %111, %107, %112 : vector<16x16xi1>, vector<16x16xf32>
    %cst_32 = arith.constant 0.000000e+00 : f32
    %114 = vector.shape_cast %5 : vector<16x1xi1> to vector<16x1xi1>
    %115 = vector.broadcast %114 : vector<16x1xi1> to vector<16x16xi1>
    %116 = vector.broadcast %cst_32 : f32 to vector<16x16xf32>
    %117 = arith.select %115, %109, %116 : vector<16x16xi1>, vector<16x16xf32>
    %118 = arith.subf %113, %103 : vector<16x16xf32>
    %119 = arith.addf %105, %117 : vector<16x16xf32>
    %120 = arith.addf %85, %85 : vector<16x16xf32>
    %121 = arith.addf %119, %120 : vector<16x16xf32>
    %122 = arith.mulf %118, %118 : vector<16x16xf32>
    %123 = arith.mulf %121, %121 : vector<16x16xf32>
    %124 = arith.addf %122, %123 : vector<16x16xf32>
    %cst_33 = arith.constant 9.99999997E-7 : f32
    %125 = vector.broadcast %cst_33 : f32 to vector<16x16xf32>
    %126 = arith.addf %124, %125 : vector<16x16xf32>
    %127 = math.sqrt %126 : vector<16x16xf32>
    %c0_34 = arith.constant 0 : index
    %c1_35 = arith.constant 1 : index
    %c0_36 = arith.constant 0 : index
    %c0_37 = arith.constant 0 : index
    %128 = vector.load %arg5[%c0_34, %c1_35, %c0_36, %c0_37] : memref<1x3x16x16xf32, #tpu.memory_space<vmem>>, vector<1x1x16x16xf32>
    %129 = vector.shape_cast %128 : vector<1x1x16x16xf32> to vector<16x16xf32>
    %130 = vector.shape_cast %127 : vector<16x16xf32> to vector<1x1x16x16xf32>
    tpu.vector_store %arg5[%c0_34, %c1_35, %c0_36, %c0_37], %130 {strides = array<i32>} : memref<1x3x16x16xf32, #tpu.memory_space<vmem>>, vector<1x1x16x16xf32>,
    %c0_38 = arith.constant 0 : index
    %c2 = arith.constant 2 : index
    %c0_39 = arith.constant 0 : index
    %c0_40 = arith.constant 0 : index
    %131 = vector.load %arg2[%c0_38, %c2, %c0_39, %c0_40] : memref<1x3x16x16xf32, #tpu.memory_space<vmem>>, vector<1x1x16x16xf32>
    %132 = vector.shape_cast %131 : vector<1x1x16x16xf32> to vector<16x16xf32>
    %c0_41 = arith.constant 0 : index
    %c2_42 = arith.constant 2 : index
    %c7_43 = arith.constant 7 : index
    %c0_44 = arith.constant 0 : index
    %133 = vector.load %arg3[%c0_41, %c2_42, %c7_43, %c0_44] : memref<1x3x8x16xf32, #tpu.memory_space<vmem>>, vector<1x1x1x16xf32>
    %134 = vector.shape_cast %133 : vector<1x1x1x16xf32> to vector<1x16xf32>
    %c0_45 = arith.constant 0 : index
    %c2_46 = arith.constant 2 : index
    %c0_47 = arith.constant 0 : index
    %c0_48 = arith.constant 0 : index
    %135 = vector.load %arg4[%c0_45, %c2_46, %c0_47, %c0_48] : memref<1x3x8x16xf32, #tpu.memory_space<vmem>>, vector<1x1x1x16xf32>
    %136 = vector.shape_cast %135 : vector<1x1x1x16xf32> to vector<1x16xf32>
    %cst_49 = arith.constant 0.000000e+00 : f32
    %137 = vector.broadcast %cst_49 : f32 to vector<1x16xf32>
    %138 = arith.select %6, %134, %137 : vector<1x16xf32>
    %139 = vector.extract_strided_slice %132 {offsets = [0, 0], sizes = [16, 15], strides = [1, 1]} : vector<16x16xf32> to vector<16x15xf32>
    %140 = tpu.concatenate %7, %139 in 1 : vector<16x1xf32>, vector<16x15xf32> -> vector<16x16xf32>
    %141 = vector.extract_strided_slice %132 {offsets = [0, 1], sizes = [16, 15], strides = [1, 1]} : vector<16x16xf32> to vector<16x15xf32>
    %142 = tpu.concatenate %141, %7 in 1 : vector<16x15xf32>, vector<16x1xf32> -> vector<16x16xf32>
    %143 = arith.addf %140, %142 : vector<16x16xf32>
    %144 = arith.addf %132, %132 : vector<16x16xf32>
    %145 = arith.addf %143, %144 : vector<16x16xf32>
    %146 = arith.subf %142, %140 : vector<16x16xf32>
    %147 = vector.extract_strided_slice %138 {offsets = [0, 0], sizes = [1, 15], strides = [1, 1]} : vector<1x16xf32> to vector<1x15xf32>
    %148 = tpu.concatenate %8, %147 in 1 : vector<1x1xf32>, vector<1x15xf32> -> vector<1x16xf32>
    %149 = vector.extract_strided_slice %138 {offsets = [0, 1], sizes = [1, 15], strides = [1, 1]} : vector<1x16xf32> to vector<1x15xf32>
    %150 = tpu.concatenate %149, %8 in 1 : vector<1x15xf32>, vector<1x1xf32> -> vector<1x16xf32>
    %151 = arith.addf %148, %150 : vector<1x16xf32>
    %152 = arith.addf %138, %138 : vector<1x16xf32>
    %153 = arith.addf %151, %152 : vector<1x16xf32>
    %154 = arith.subf %150, %148 : vector<1x16xf32>
    %155 = vector.extract_strided_slice %136 {offsets = [0, 0], sizes = [1, 15], strides = [1, 1]} : vector<1x16xf32> to vector<1x15xf32>
    %156 = tpu.concatenate %8, %155 in 1 : vector<1x1xf32>, vector<1x15xf32> -> vector<1x16xf32>
    %157 = vector.extract_strided_slice %136 {offsets = [0, 1], sizes = [1, 15], strides = [1, 1]} : vector<1x16xf32> to vector<1x15xf32>
    %158 = tpu.concatenate %157, %8 in 1 : vector<1x15xf32>, vector<1x1xf32> -> vector<1x16xf32>
    %159 = arith.addf %156, %158 : vector<1x16xf32>
    %160 = arith.addf %136, %136 : vector<1x16xf32>
    %161 = arith.addf %159, %160 : vector<1x16xf32>
    %162 = arith.subf %158, %156 : vector<1x16xf32>
    %163 = vector.extract_strided_slice %145 {offsets = [0, 0], sizes = [15, 16], strides = [1, 1]} : vector<16x16xf32> to vector<15x16xf32>
    %164 = tpu.concatenate %153, %163 in 0 : vector<1x16xf32>, vector<15x16xf32> -> vector<16x16xf32>
    %165 = vector.extract_strided_slice %146 {offsets = [0, 0], sizes = [15, 16], strides = [1, 1]} : vector<16x16xf32> to vector<15x16xf32>
    %166 = tpu.concatenate %154, %165 in 0 : vector<1x16xf32>, vector<15x16xf32> -> vector<16x16xf32>
    %167 = vector.extract_strided_slice %145 {offsets = [1, 0], sizes = [15, 16], strides = [1, 1]} : vector<16x16xf32> to vector<15x16xf32>
    %168 = tpu.concatenate %167, %161 in 0 : vector<15x16xf32>, vector<1x16xf32> -> vector<16x16xf32>
    %169 = vector.extract_strided_slice %146 {offsets = [1, 0], sizes = [15, 16], strides = [1, 1]} : vector<16x16xf32> to vector<15x16xf32>
    %170 = tpu.concatenate %169, %162 in 0 : vector<15x16xf32>, vector<1x16xf32> -> vector<16x16xf32>
    %cst_50 = arith.constant 0.000000e+00 : f32
    %171 = vector.shape_cast %5 : vector<16x1xi1> to vector<16x1xi1>
    %172 = vector.broadcast %171 : vector<16x1xi1> to vector<16x16xi1>
    %173 = vector.broadcast %cst_50 : f32 to vector<16x16xf32>
    %174 = arith.select %172, %168, %173 : vector<16x16xi1>, vector<16x16xf32>
    %cst_51 = arith.constant 0.000000e+00 : f32
    %175 = vector.shape_cast %5 : vector<16x1xi1> to vector<16x1xi1>
    %176 = vector.broadcast %175 : vector<16x1xi1> to vector<16x16xi1>
    %177 = vector.broadcast %cst_51 : f32 to vector<16x16xf32>
    %178 = arith.select %176, %170, %177 : vector<16x16xi1>, vector<16x16xf32>
    %179 = arith.subf %174, %164 : vector<16x16xf32>
    %180 = arith.addf %166, %178 : vector<16x16xf32>
    %181 = arith.addf %146, %146 : vector<16x16xf32>
    %182 = arith.addf %180, %181 : vector<16x16xf32>
    %183 = arith.mulf %179, %179 : vector<16x16xf32>
    %184 = arith.mulf %182, %182 : vector<16x16xf32>
    %185 = arith.addf %183, %184 : vector<16x16xf32>
    %cst_52 = arith.constant 9.99999997E-7 : f32
    %186 = vector.broadcast %cst_52 : f32 to vector<16x16xf32>
    %187 = arith.addf %185, %186 : vector<16x16xf32>
    %188 = math.sqrt %187 : vector<16x16xf32>
    %c0_53 = arith.constant 0 : index
    %c2_54 = arith.constant 2 : index
    %c0_55 = arith.constant 0 : index
    %c0_56 = arith.constant 0 : index
    %189 = vector.load %arg5[%c0_53, %c2_54, %c0_55, %c0_56] : memref<1x3x16x16xf32, #tpu.memory_space<vmem>>, vector<1x1x16x16xf32>
    %190 = vector.shape_cast %189 : vector<1x1x16x16xf32> to vector<16x16xf32>
    %191 = vector.shape_cast %188 : vector<16x16xf32> to vector<1x1x16x16xf32>
    tpu.vector_store %arg5[%c0_53, %c2_54, %c0_55, %c0_56], %191 {strides = array<i32>} : memref<1x3x16x16xf32, #tpu.memory_space<vmem>>, vector<1x1x16x16xf32>,
    return
  }
  func.func @transform_0(%arg0: i32, %arg1: i32) -> (i32, i32, i32, i32) {
    %c0_i32 = arith.constant 0 : i32
    %c0_i32_0 = arith.constant 0 : i32
    %c0_i32_1 = arith.constant 0 : i32
    return %arg0, %c0_i32, %arg1, %c0_i32_0 : i32, i32, i32, i32
  }
  func.func @transform_1(%arg0: i32, %arg1: i32) -> (i32, i32, i32, i32) {
    %c2_i32 = arith.constant 2 : i32
    %0 = arith.muli %arg1, %c2_i32 : i32
    %c1_i32 = arith.constant 1 : i32
    %1 = arith.subi %0, %c1_i32 : i32
    %c0_i32 = arith.constant 0 : i32
    %2 = arith.maxsi %1, %c0_i32 : i32
    %c0_i32_0 = arith.constant 0 : i32
    %c0_i32_1 = arith.constant 0 : i32
    %c0_i32_2 = arith.constant 0 : i32
    return %arg0, %c0_i32_0, %2, %c0_i32_1 : i32, i32, i32, i32
  }
  func.func @transform_2(%arg0: i32, %arg1: i32) -> (i32, i32, i32, i32) {
    %c1_i32 = arith.constant 1 : i32
    %0 = arith.addi %arg1, %c1_i32 : i32
    %c2_i32 = arith.constant 2 : i32
    %1 = arith.muli %0, %c2_i32 : i32
    %c1_i32_0 = arith.constant 1 : i32
    %2 = arith.minsi %1, %c1_i32_0 : i32
    %c0_i32 = arith.constant 0 : i32
    %c0_i32_1 = arith.constant 0 : i32
    %c0_i32_2 = arith.constant 0 : i32
    return %arg0, %c0_i32, %2, %c0_i32_1 : i32, i32, i32, i32
  }
  func.func @transform_3(%arg0: i32, %arg1: i32) -> (i32, i32, i32, i32) {
    %c0_i32 = arith.constant 0 : i32
    %c0_i32_0 = arith.constant 0 : i32
    %c0_i32_1 = arith.constant 0 : i32
    return %arg0, %c0_i32, %arg1, %c0_i32_0 : i32, i32, i32, i32
  }
}

</mosaic_0001>

<llo_original>
// kernel: tpu_custom_call.1
$region0: #{tpu_custom_call.1}
  #allocation0 [shape = 'u32[]', space=smem, size = 0x4, offset = 0x4, fixed_abs, tag = 'smem constant byte address 0x4 - core index']
  #allocation1 [shape = 'u32[72,128]{1,0:T(1,128)}', space=vmem, size = 0x9000, scoped, tag = 'internal scratch']
  %s0 = inlined_call_operand.hbm [shape: f32[2,4,16,16], index: 0, kind: input, shape index: {}]
  %s1 = inlined_call_operand.hbm [shape: f32[2,4,16,16], index: 1, kind: input, shape index: {}]
  %s2 = inlined_call_operand.hbm [shape: f32[2,4,16,16], index: 2, kind: input, shape index: {}]
  %s3 = inlined_call_operand.hbm [shape: f32[2,3,16,16], index: 3, kind: output, shape index: {}]
  %s4 = sld [smem:[#allocation0]]
  $region57: #{tpu_custom_call.1} parent=0
    _
  %s6 = ssub.s32 1, %s4
  %s7 = scalar_select 0, %s6, %s4
  $region1: #{tpu_custom_call.1} parent=0
    #allocation2 [shape = 'u8[49152]{0}', space=vmem, size = 0xc000, scoped, tag = 'input window, operand 0']
    #allocation3 [shape = 's32[2]{0}', space=sflag, size = 0x8, scoped, tag = 'scoped memory for tpu_custom_call.1']
    #allocation4 [shape = 's32[2]{0}', space=sflag, size = 0x8, scoped, tag = 'scoped memory for tpu_custom_call.1']
    #allocation5 [shape = 'u8[24576]{0}', space=vmem, size = 0x6000, scoped, tag = 'input window, operand 1']
    #allocation6 [shape = 's32[2]{0}', space=sflag, size = 0x8, scoped, tag = 'scoped memory for tpu_custom_call.1']
    #allocation7 [shape = 'u8[24576]{0}', space=vmem, size = 0x6000, scoped, tag = 'input window, operand 2']
    #allocation8 [shape = 'u8[49152]{0}', space=vmem, size = 0xc000, scoped, tag = 'output window, operand 0']
    %8 = vsyncpa [#allocation3], 0
    %s9 = scalar_lea.sflag [#allocation3], 1
    %10 = vsyncpa %s9, 0
    %11 = vsyncpa [#allocation6], 0
    %s12 = scalar_lea.sflag [#allocation6], 1
    %13 = vsyncpa %s12, 0
    %14 = vsyncpa [#allocation4], 0
    %s15 = scalar_lea.sflag [#allocation4], 1
    %16 = vsyncpa %s15, 0
    loop: start=0, step=1, limit=4
    $region2: #{tpu_custom_call.1} parent=1 // loop_pre_header
      _
    $region3: #{tpu_custom_call.1} parent=1 // loop_header
      %s18 = sphi 0, %s22
      %p19 = scmp.ge.s32.totalorder %s18, 4
      %s25 = sphi 0, %s37
      %s26 = sphi 0, %s33
      %s27 = sphi 0, %s25
      %s28 = sphi 0, %s26
      %s29 = sphi 0, %s27
      %s30 = sphi 0, %s28
      %s42 = sphi 0, %s44
      %s45 = sphi 0, %s42
      %s46 = sphi 0, %s45
      %s62 = sphi 0, %s46
      %s78 = sphi 0, %s80
      %s81 = sphi 0, %s78
      %s82 = sphi 0, %s81
      %s98 = sphi 0, %s82
      %s114 = sphi 0, %s116
      %s117 = sphi 0, %s114
      %s118 = sphi 0, %s117
      %s134 = sphi 0, %s118
      %s142 = sphi 0, %s144
      %s145 = sphi 0, %s142
      %s146 = sphi 0, %s145
      %s162 = sphi 0, %s146
    $region4: #{tpu_custom_call.1} parent=1 // loop_header_branch
      %21 = sbr.rel (%p19) target = $region8
    $region5: #{tpu_custom_call.1} parent=1 // loop_body
      %s23 = ssub.s32 %s18, 1
      %s24 = ssub.s32 %s18, 2
      %s31 = sadd.s32 1, %s26
      %p32 = scmp.ge.s32.totalorder %s31, 1
      %s33 = scalar_select %p32, 0, %s31
      %s34 = sadd.s32 1, %s25
      %s35 = scalar_select %p32, %s34, %s25
      %p36 = scmp.ge.s32.totalorder %s35, 2
      %s37 = scalar_select %p36, 0, %s35
      %s38 = ssub.s32 %s25, %s37
      %s39 = ssub.s32 %s26, %s33
      %s40 = sor.u32 %s38, %s39
      %p41 = scmp.eq.s32.totalorder %s40, 0
      %s43 = sadd.s32 %s42, 1
      %s44 = scalar_select %p41, %s42, %s43
      %p47 = pneg %p41
      %p48 = scmp.eq.s32.totalorder %s18, 1
      %p49 = por %p47, %p48
      %p50 = scmp.ne.s32.totalorder %s42, %s45
      %p51 = scmp.eq.s32.totalorder %s18, 0
      %p52 = por %p50, %p51
      %p53 = scmp.ne.s32.totalorder %s42, %s45
      %p54 = scmp.eq.s32.totalorder %s23, 1
      %p55 = por %p53, %p54
      %p56 = scmp.ne.s32.totalorder %s45, %s46
      %p57 = scmp.eq.s32.totalorder %s23, 0
      %p58 = por %p56, %p57
      %p59 = scmp.ne.s32.totalorder %s45, %s46
      %p60 = scmp.eq.s32.totalorder %s24, 1
      %p61 = por %p59, %p60
      %p63 = scmp.ne.s32.totalorder %s46, %s62
      %p64 = scmp.eq.s32.totalorder %s24, 0
      %p65 = por %p63, %p64
      %s66 = smul.u32 %s26, 2
      %s67 = ssub.s32 %s66, 1
      %p68 = scmp.gt.s32.totalorder %s67, 0
      %s69 = scalar_select %p68, %s67, 0
      %s70 = smul.u32 %s33, 2
      %s71 = ssub.s32 %s70, 1
      %p72 = scmp.gt.s32.totalorder %s71, 0
      %s73 = scalar_select %p72, %s71, 0
      %s74 = ssub.s32 %s25, %s37
      %s75 = ssub.s32 %s69, %s73
      %s76 = sor.u32 %s74, %s75
      %p77 = scmp.eq.s32.totalorder %s76, 0
      %s79 = sadd.s32 %s78, 1
      %s80 = scalar_select %p77, %s78, %s79
      %p83 = pneg %p77
      %p84 = scmp.eq.s32.totalorder %s18, 1
      %p85 = por %p83, %p84
      %p86 = scmp.ne.s32.totalorder %s78, %s81
      %p87 = scmp.eq.s32.totalorder %s18, 0
      %p88 = por %p86, %p87
      %p89 = scmp.ne.s32.totalorder %s78, %s81
      %p90 = scmp.eq.s32.totalorder %s23, 1
      %p91 = por %p89, %p90
      %p92 = scmp.ne.s32.totalorder %s81, %s82
      %p93 = scmp.eq.s32.totalorder %s23, 0
      %p94 = por %p92, %p93
      %p95 = scmp.ne.s32.totalorder %s81, %s82
      %p96 = scmp.eq.s32.totalorder %s24, 1
      %p97 = por %p95, %p96
      %p99 = scmp.ne.s32.totalorder %s82, %s98
      %p100 = scmp.eq.s32.totalorder %s24, 0
      %p101 = por %p99, %p100
      %s102 = sadd.s32 %s26, 1
      %s103 = smul.u32 %s102, 2
      %p104 = scmp.lt.s32.totalorder %s103, 1
      %s105 = scalar_select %p104, %s103, 1
      %s106 = sadd.s32 %s33, 1
      %s107 = smul.u32 %s106, 2
      %p108 = scmp.lt.s32.totalorder %s107, 1
      %s109 = scalar_select %p108, %s107, 1
      %s110 = ssub.s32 %s25, %s37
      %s111 = ssub.s32 %s105, %s109
      %s112 = sor.u32 %s110, %s111
      %p113 = scmp.eq.s32.totalorder %s112, 0
      %s115 = sadd.s32 %s114, 1
      %s116 = scalar_select %p113, %s114, %s115
      %p119 = pneg %p113
      %p120 = scmp.eq.s32.totalorder %s18, 1
      %p121 = por %p119, %p120
      %p122 = scmp.ne.s32.totalorder %s114, %s117
      %p123 = scmp.eq.s32.totalorder %s18, 0
      %p124 = por %p122, %p123
      %p125 = scmp.ne.s32.totalorder %s114, %s117
      %p126 = scmp.eq.s32.totalorder %s23, 1
      %p127 = por %p125, %p126
      %p128 = scmp.ne.s32.totalorder %s117, %s118
      %p129 = scmp.eq.s32.totalorder %s23, 0
      %p130 = por %p128, %p129
      %p131 = scmp.ne.s32.totalorder %s117, %s118
      %p132 = scmp.eq.s32.totalorder %s24, 1
      %p133 = por %p131, %p132
      %p135 = scmp.ne.s32.totalorder %s118, %s134
      %p136 = scmp.eq.s32.totalorder %s24, 0
      %p137 = por %p135, %p136
      %s138 = ssub.s32 %s25, %s37
      %s139 = ssub.s32 %s26, %s33
      %s140 = sor.u32 %s138, %s139
      %p141 = scmp.eq.s32.totalorder %s140, 0
      %s143 = sadd.s32 %s142, 1
      %s144 = scalar_select %p141, %s142, %s143
      %p147 = pneg %p141
      %p148 = scmp.eq.s32.totalorder %s18, 1
      %p149 = por %p147, %p148
      %p150 = scmp.ne.s32.totalorder %s142, %s145
      %p151 = scmp.eq.s32.totalorder %s18, 0
      %p152 = por %p150, %p151
      %p153 = scmp.ne.s32.totalorder %s142, %s145
      %p154 = scmp.eq.s32.totalorder %s23, 1
      %p155 = por %p153, %p154
      %p156 = scmp.ne.s32.totalorder %s145, %s146
      %p157 = scmp.eq.s32.totalorder %s23, 0
      %p158 = por %p156, %p157
      %p159 = scmp.ne.s32.totalorder %s145, %s146
      %p160 = scmp.eq.s32.totalorder %s24, 1
      %p161 = por %p159, %p160
      %p163 = scmp.ne.s32.totalorder %s146, %s162
      %p164 = scmp.eq.s32.totalorder %s24, 0
      %p165 = por %p163, %p164
      %p166 = scmp.le.s32.totalorder 1, %s18
      %p167 = scmp.lt.s32.totalorder %s18, 3
      %p168 = pnand %p166, %p167
      %p169 = pneg %p168
      // Predicated region
      $region9: #{tpu_custom_call.1} parent=5 // pred_check
        _
      $region10: #{tpu_custom_call.1} parent=5 // pred_check_branch
        %171 = sbr.rel (%p168) target = $region12
      $region11: #{tpu_custom_call.1} parent=5 // pred_region
        %s172 = ssub.s32 %s18, 1
      $region12: #{tpu_custom_call.1} parent=5 // pred_fallthru
        _
      %p173 = scmp.lt.s32.totalorder %s18, 2
      // Predicated region
      $region13: #{tpu_custom_call.1} parent=5 // pred_check
        %p174 = pneg %p173
      $region14: #{tpu_custom_call.1} parent=5 // pred_check_branch
        %176 = sbr.rel (%p174) target = $region16
      $region15: #{tpu_custom_call.1} parent=5 // pred_region
        // Predicated region
        $region17: #{tpu_custom_call.1} parent=15 // pred_check
          %p177 = pneg %p52
        $region18: #{tpu_custom_call.1} parent=15 // pred_check_branch
          %179 = sbr.rel (%p177) target = $region20
        $region19: #{tpu_custom_call.1} parent=15 // pred_region
          %s180 = sand.u32 %s42, 1
          %s181 = scalar_lea.sflag [#allocation3], %s180
          %s182 = sand.u32 %s42, 1
          %s183 = smul.addr %s182, 48
          %s184 = scalar_lea.vmem [#allocation2], %s183
          %s185 = smul.u32 2, %s26
          %187 = vsyncadd %s181, 0
          %s188 = smul.addr %s25, 8
          %s189 = sadd.s32 %s185, %s188
          %s190 = smul.addr %s189, 8
          %s191 = scalar_lea.hbm %s0, %s190
          %s192 = sshll.u32 %s191, 4
          %s193 = int_to_ptr.hbm [resolvable:$true] %s192
          %s194 = sshll.u32 %s184, 4
          %s195 = int_to_ptr.vmem [resolvable:$true] %s194
          %200 = dma.hbm_to_vmem [thread:$0]  %s193, 768, %s195, %s181, 128, 128, 8
        $region20: #{tpu_custom_call.1} parent=15 // pred_fallthru
          _
        // Predicated region
        $region21: #{tpu_custom_call.1} parent=15 // pred_check
          %p201 = pneg %p88
        $region22: #{tpu_custom_call.1} parent=15 // pred_check_branch
          %203 = sbr.rel (%p201) target = $region24
        $region23: #{tpu_custom_call.1} parent=15 // pred_region
          %s204 = sand.u32 %s18, 1
          %s205 = scalar_lea.sflag [#allocation6], %s204
          %s206 = sand.u32 %s78, 1
          %s207 = smul.addr %s206, 24
          %s208 = scalar_lea.vmem [#allocation5], %s207
          %s209 = smul.u32 %s26, 2
          %s210 = ssub.s32 %s209, 1
          %p211 = scmp.gt.s32.totalorder %s210, 0
          %s212 = scalar_select %p211, %s210, 0
          %214 = vsyncadd %s205, 0
          %s215 = smul.addr %s25, 8
          %s216 = sadd.s32 %s212, %s215
          %s217 = smul.addr %s216, 8
          %s218 = scalar_lea.hbm %s1, %s217
          %s219 = sshll.u32 %s218, 4
          %s220 = int_to_ptr.hbm [resolvable:$true] %s219
          %s221 = sshll.u32 %s208, 4
          %s222 = int_to_ptr.vmem [resolvable:$true] %s221
          %227 = dma.hbm_to_vmem [thread:$0]  %s220, 384, %s222, %s205, 256, 128, 8
        $region24: #{tpu_custom_call.1} parent=15 // pred_fallthru
          _
        // Predicated region
        $region25: #{tpu_custom_call.1} parent=15 // pred_check
          %p228 = pneg %p124
        $region26: #{tpu_custom_call.1} parent=15 // pred_check_branch
          %230 = sbr.rel (%p228) target = $region28
        $region27: #{tpu_custom_call.1} parent=15 // pred_region
          %s231 = sand.u32 %s18, 1
          %s232 = scalar_lea.sflag [#allocation6], %s231
          %s233 = sand.u32 %s114, 1
          %s234 = smul.addr %s233, 24
          %s235 = scalar_lea.vmem [#allocation7], %s234
          %s236 = sadd.s32 %s26, 1
          %s237 = smul.u32 %s236, 2
          %p238 = scmp.lt.s32.totalorder %s237, 1
          %s239 = scalar_select %p238, %s237, 1
          %241 = vsyncadd %s232, 0
          %s242 = smul.addr %s25, 8
          %s243 = sadd.s32 %s239, %s242
          %s244 = smul.addr %s243, 8
          %s245 = scalar_lea.hbm %s2, %s244
          %s246 = sshll.u32 %s245, 4
          %s247 = int_to_ptr.hbm [resolvable:$true] %s246
          %s248 = sshll.u32 %s235, 4
          %s249 = int_to_ptr.vmem [resolvable:$true] %s248
          %254 = dma.hbm_to_vmem [thread:$0]  %s247, 384, %s249, %s232, 256, 128, 8
        $region28: #{tpu_custom_call.1} parent=15 // pred_fallthru
          _
      $region16: #{tpu_custom_call.1} parent=5 // pred_fallthru
        _
      %p255 = scmp.le.s32.totalorder 1, %s18
      %p256 = scmp.lt.s32.totalorder %s18, 3
      %p257 = pnand %p255, %p256
      %p258 = pneg %p257
      // Predicated region
      $region29: #{tpu_custom_call.1} parent=5 // pred_check
        _
      $region30: #{tpu_custom_call.1} parent=5 // pred_check_branch
        %260 = sbr.rel (%p257) target = $region32
      $region31: #{tpu_custom_call.1} parent=5 // pred_region
        %s261 = ssub.s32 %s18, 1
        %s262 = sand.u32 %s45, 1
        %s263 = scalar_lea.sflag [#allocation3], %s262
        %s264 = sand.u32 %s45, 1
        %s265 = smul.addr %s264, 48
        %s266 = scalar_lea.vmem [#allocation2], %s265
        // Predicated region
        $region33: #{tpu_custom_call.1} parent=31 // pred_check
          %p267 = pneg %p58
        $region34: #{tpu_custom_call.1} parent=31 // pred_check_branch
          %269 = sbr.rel (%p267) target = $region36
        $region35: #{tpu_custom_call.1} parent=31 // pred_region
          %271 = dma.done %s263, 768
        $region36: #{tpu_custom_call.1} parent=31 // pred_fallthru
          _
        %s272 = sand.u32 %s23, 1
        %s273 = scalar_lea.sflag [#allocation6], %s272
        %s274 = sand.u32 %s81, 1
        %s275 = smul.addr %s274, 24
        %s276 = scalar_lea.vmem [#allocation5], %s275
        // Predicated region
        $region37: #{tpu_custom_call.1} parent=31 // pred_check
          %p277 = pneg %p94
        $region38: #{tpu_custom_call.1} parent=31 // pred_check_branch
          %279 = sbr.rel (%p277) target = $region40
        $region39: #{tpu_custom_call.1} parent=31 // pred_region
          %281 = dma.done %s273, 384
        $region40: #{tpu_custom_call.1} parent=31 // pred_fallthru
          _
        %s282 = sand.u32 %s23, 1
        %s283 = scalar_lea.sflag [#allocation6], %s282
        %s284 = sand.u32 %s117, 1
        %s285 = smul.addr %s284, 24
        %s286 = scalar_lea.vmem [#allocation7], %s285
        // Predicated region
        $region41: #{tpu_custom_call.1} parent=31 // pred_check
          %p287 = pneg %p130
        $region42: #{tpu_custom_call.1} parent=31 // pred_check_branch
          %289 = sbr.rel (%p287) target = $region44
        $region43: #{tpu_custom_call.1} parent=31 // pred_region
          %291 = dma.done %s283, 384
        $region44: #{tpu_custom_call.1} parent=31 // pred_fallthru
          _
        %s292 = sand.u32 %s45, 1
        %s293 = scalar_lea.sflag [#allocation3], %s292
        %s294 = sand.u32 %s45, 1
        %s295 = smul.addr %s294, 48
        %s296 = scalar_lea.vmem [#allocation2], %s295
        %p297 = pneg %p58
        %p298 = pneg %p55
        %s299 = sand.u32 %s23, 1
        %s300 = scalar_lea.sflag [#allocation6], %s299
        %s301 = sand.u32 %s81, 1
        %s302 = smul.addr %s301, 24
        %s303 = scalar_lea.vmem [#allocation5], %s302
        %p304 = pneg %p94
        %p305 = pneg %p91
        %s306 = sand.u32 %s23, 1
        %s307 = scalar_lea.sflag [#allocation6], %s306
        %s308 = sand.u32 %s117, 1
        %s309 = smul.addr %s308, 24
        %s310 = scalar_lea.vmem [#allocation7], %s309
        %p311 = pneg %p130
        %p312 = pneg %p127
        %p313 = pneg %p158
        %p314 = pneg %p155
        %s315 = sand.u32 %s145, 1
        %s316 = scalar_lea.sflag [#allocation4], %s315
        %s317 = sand.u32 %s145, 1
        %s318 = smul.addr %s317, 48
        %s319 = scalar_lea.vmem [#allocation8], %s318
        %s320 = smul.u32 2, %s28
        %s321 = smul.u32 %s28, 2
        %s322 = ssub.s32 %s321, 1
        %p323 = scmp.gt.s32.totalorder %s322, 0
        %s324 = scalar_select %p323, %s322, 0
        %s325 = sadd.s32 %s28, 1
        %s326 = smul.u32 %s325, 2
        %p327 = scmp.lt.s32.totalorder %s326, 1
        %s328 = scalar_select %p327, %s326, 1
        %s329 = smul.u32 2, %s28
        %s330 = smul.u32 %s28, 16
        %v331 = vlaneseq
        %v332 = vshrl.u32 %v331, 7
        %v333 = vadd.s32 %v332, 8
        %v334 = vstv %s330
        %v335 = vadd.s32 %v334, %v332
        %v336 = vadd.s32 %v334, %v333
        %vm337 = vcmp.lt.s32.totalorder %v335, 15
        %vm338 = vcmp.lt.s32.totalorder %v336, 15
        %p339 = scmp.gt.s32.totalorder %s28, 0
        %v340 = vld [vmem:[%s266] sm:$0xff]
        %v341 = vld [vmem:[%s266 + $0x8] sm:$0xff]
        %v342 = vld [vmem:[%s276 + $0x7] sm:$0x1]
        %v343 = vld [vmem:[%s286] sm:$0x1]
        %s344 = scalar_select %p339, 1, 0
        %v345 = vstv %s344
        %vm346 = vcmp.eq.s32.totalorder %v345, 1
        %v347 = vsel %vm346, %v342, 0.0
        %350 = vrot.lane.b32.xlu0 %v340, 1
        %v351 = vpop.permute.xlu0 %350
        %352 = vrot.lane.b32.xlu0 %v341, 1
        %v353 = vpop.permute.xlu0 %352
        %vm356 = vcmask 7168
        %v357 = vsel %vm356, 0.0, %v351
        %v358 = vsel %vm356, 0.0, %v353
        %359 = vrot.lane.b32.xlu0 %v340, 127
        %v360 = vpop.permute.xlu0 %359
        %361 = vrot.lane.b32.xlu0 %v341, 127
        %v362 = vpop.permute.xlu0 %361
        %vm365 = vcmask 121856
        %v366 = vsel %vm365, %v360, 0.0
        %v367 = vsel %vm365, %v362, 0.0
        %v368 = vadd.f32 %v357, %v366
        %v369 = vadd.f32 %v358, %v367
        %v370 = vadd.f32 %v340, %v340
        %v371 = vadd.f32 %v341, %v341
        %v372 = vadd.f32 %v368, %v370
        %v373 = vadd.f32 %v369, %v371
        %v374 = vsub.f32 %v366, %v357
        %v375 = vsub.f32 %v367, %v358
        %377 = vrot.lane.b32.xlu0 %v347, 1
        %v378 = vpop.permute.xlu0 %377
        %v380 = vsel %vm356, 0.0, %v378
        %381 = vrot.lane.b32.xlu0 %v347, 127
        %v382 = vpop.permute.xlu0 %381
        %v384 = vsel %vm365, %v382, 0.0
        %v385 = vadd.f32 %v380, %v384
        %v386 = vadd.f32 %v347, %v347
        %v387 = vadd.f32 %v385, %v386
        %v388 = vsub.f32 %v384, %v380
        %390 = vrot.lane.b32.xlu0 %v343, 1
        %v391 = vpop.permute.xlu0 %390
        %v393 = vsel %vm356, 0.0, %v391
        %394 = vrot.lane.b32.xlu0 %v343, 127
        %v395 = vpop.permute.xlu0 %394
        %v397 = vsel %vm365, %v395, 0.0
        %v398 = vadd.f32 %v393, %v397
        %v399 = vadd.f32 %v343, %v343
        %v400 = vadd.f32 %v398, %v399
        %v401 = vsub.f32 %v397, %v393
        %vm404 = vcmask 1040384
        %v405 = vrot.slane %v372, 7
        %v406 = vrot.slane %v373, 7
        %v407 = vsel %vm404, %v405, %v406
        %v410 = vsel %vm404, %v387, %v405
        %v413 = vrot.slane %v374, 7
        %v414 = vrot.slane %v375, 7
        %v415 = vsel %vm404, %v413, %v414
        %v418 = vsel %vm404, %v388, %v413
        %vm419 = vcmask 1046528
        %v420 = vrot.slane %v372, 1
        %v421 = vrot.slane %v373, 1
        %v422 = vsel %vm419, %v420, %v421
        %v426 = vrot.slane %v400, 1
        %v428 = vsel %vm419, %v421, %v426
        %v429 = vrot.slane %v374, 1
        %v430 = vrot.slane %v375, 1
        %v431 = vsel %vm419, %v429, %v430
        %v435 = vrot.slane %v401, 1
        %v437 = vsel %vm419, %v430, %v435
        %v438 = vsel %vm337, 1, 0
        %v439 = vsel %vm338, 1, 0
        %vm440 = vcmp.eq.s32.totalorder %v438, 1
        %vm441 = vcmp.eq.s32.totalorder %v439, 1
        %v442 = vsel %vm440, %v422, 0.0
        %v443 = vsel %vm441, %v428, 0.0
        %v444 = vsel %vm440, %v431, 0.0
        %v445 = vsel %vm441, %v437, 0.0
        %v446 = vsub.f32 %v442, %v410
        %v447 = vsub.f32 %v443, %v407
        %v448 = vadd.f32 %v418, %v444
        %v449 = vadd.f32 %v415, %v445
        %v450 = vadd.f32 %v374, %v374
        %v451 = vadd.f32 %v375, %v375
        %v452 = vadd.f32 %v448, %v450
        %v453 = vadd.f32 %v449, %v451
        %v454 = vmul.f32 %v446, %v446
        %v455 = vmul.f32 %v447, %v447
        %v456 = vmul.f32 %v452, %v452
        %v457 = vmul.f32 %v453, %v453
        %v458 = vadd.f32 %v454, %v456
        %v459 = vadd.f32 %v455, %v457
        %v460 = vadd.f32 %v458, 1e-06
        %v461 = vadd.f32 %v459, 1e-06
        %v462 = vrsqrt.pop %v460
        %v463 = vmul.f32 %v462, %v460
        %v464 = vmul.f32 %v463, %v462
        %v465 = vmul.f32 0.5, %v464
        %v466 = vsub.f32 1.5, %v465
        %v467 = vmul.f32 %v462, %v466
        %v468 = vmul.f32 %v460, %v467
        %vm469 = vcmp.eq.f32.partialorder %v460, inf
        %v470 = vsel %vm469, %v460, %v468
        %vm471 = vcmp.eq.f32.partialorder %v460, 0.0
        %v472 = vand.u32 %v460, 2147483648
        %v473 = vsel %vm471, %v472, %v470
        %v474 = vrsqrt.pop %v461
        %v475 = vmul.f32 %v474, %v461
        %v476 = vmul.f32 %v475, %v474
        %v477 = vmul.f32 0.5, %v476
        %v478 = vsub.f32 1.5, %v477
        %v479 = vmul.f32 %v474, %v478
        %v480 = vmul.f32 %v461, %v479
        %vm481 = vcmp.eq.f32.partialorder %v461, inf
        %v482 = vsel %vm481, %v461, %v480
        %vm483 = vcmp.eq.f32.partialorder %v461, 0.0
        %v484 = vand.u32 %v461, 2147483648
        %v485 = vsel %vm483, %v484, %v482
        %vm486 = vcmask 130048
        %487 = vst.msk [vmem:[%s319] sm:$0xff] %vm486, %v473
        %488 = vst.msk [vmem:[%s319 + $0x8] sm:$0xff] %vm486, %v485
        %s489 = scalar_lea.vmem %s266, 16 [#allocation2]
        %v490 = vld [vmem:[%s489] sm:$0xff]
        %v491 = vld [vmem:[%s489 + $0x8] sm:$0xff]
        %s492 = scalar_lea.vmem %s276, 8 [#allocation5]
        %v493 = vld [vmem:[%s492 + $0x7] sm:$0x1]
        %s494 = scalar_lea.vmem %s286, 8 [#allocation7]
        %v495 = vld [vmem:[%s494] sm:$0x1]
        %v496 = vsel %vm346, %v493, 0.0
        %499 = vrot.lane.b32.xlu0 %v490, 1
        %v500 = vpop.permute.xlu0 %499
        %501 = vrot.lane.b32.xlu0 %v491, 1
        %v502 = vpop.permute.xlu0 %501
        %v505 = vsel %vm356, 0.0, %v500
        %v506 = vsel %vm356, 0.0, %v502
        %507 = vrot.lane.b32.xlu0 %v490, 127
        %v508 = vpop.permute.xlu0 %507
        %509 = vrot.lane.b32.xlu0 %v491, 127
        %v510 = vpop.permute.xlu0 %509
        %v513 = vsel %vm365, %v508, 0.0
        %v514 = vsel %vm365, %v510, 0.0
        %v515 = vadd.f32 %v505, %v513
        %v516 = vadd.f32 %v506, %v514
        %v517 = vadd.f32 %v490, %v490
        %v518 = vadd.f32 %v491, %v491
        %v519 = vadd.f32 %v515, %v517
        %v520 = vadd.f32 %v516, %v518
        %v521 = vsub.f32 %v513, %v505
        %v522 = vsub.f32 %v514, %v506
        %524 = vrot.lane.b32.xlu0 %v496, 1
        %v525 = vpop.permute.xlu0 %524
        %v527 = vsel %vm356, 0.0, %v525
        %528 = vrot.lane.b32.xlu0 %v496, 127
        %v529 = vpop.permute.xlu0 %528
        %v531 = vsel %vm365, %v529, 0.0
        %v532 = vadd.f32 %v527, %v531
        %v533 = vadd.f32 %v496, %v496
        %v534 = vadd.f32 %v532, %v533
        %v535 = vsub.f32 %v531, %v527
        %537 = vrot.lane.b32.xlu0 %v495, 1
        %v538 = vpop.permute.xlu0 %537
        %v540 = vsel %vm356, 0.0, %v538
        %541 = vrot.lane.b32.xlu0 %v495, 127
        %v542 = vpop.permute.xlu0 %541
        %v544 = vsel %vm365, %v542, 0.0
        %v545 = vadd.f32 %v540, %v544
        %v546 = vadd.f32 %v495, %v495
        %v547 = vadd.f32 %v545, %v546
        %v548 = vsub.f32 %v544, %v540
        %v551 = vrot.slane %v519, 7
        %v552 = vrot.slane %v520, 7
        %v553 = vsel %vm404, %v551, %v552
        %v556 = vsel %vm404, %v534, %v551
        %v559 = vrot.slane %v521, 7
        %v560 = vrot.slane %v522, 7
        %v561 = vsel %vm404, %v559, %v560
        %v564 = vsel %vm404, %v535, %v559
        %v565 = vrot.slane %v519, 1
        %v566 = vrot.slane %v520, 1
        %v567 = vsel %vm419, %v565, %v566
        %v571 = vrot.slane %v547, 1
        %v573 = vsel %vm419, %v566, %v571
        %v574 = vrot.slane %v521, 1
        %v575 = vrot.slane %v522, 1
        %v576 = vsel %vm419, %v574, %v575
        %v580 = vrot.slane %v548, 1
        %v582 = vsel %vm419, %v575, %v580
        %v583 = vsel %vm440, %v567, 0.0
        %v584 = vsel %vm441, %v573, 0.0
        %v585 = vsel %vm440, %v576, 0.0
        %v586 = vsel %vm441, %v582, 0.0
        %v587 = vsub.f32 %v583, %v556
        %v588 = vsub.f32 %v584, %v553
        %v589 = vadd.f32 %v564, %v585
        %v590 = vadd.f32 %v561, %v586
        %v591 = vadd.f32 %v521, %v521
        %v592 = vadd.f32 %v522, %v522
        %v593 = vadd.f32 %v589, %v591
        %v594 = vadd.f32 %v590, %v592
        %v595 = vmul.f32 %v587, %v587
        %v596 = vmul.f32 %v588, %v588
        %v597 = vmul.f32 %v593, %v593
        %v598 = vmul.f32 %v594, %v594
        %v599 = vadd.f32 %v595, %v597
        %v600 = vadd.f32 %v596, %v598
        %v601 = vadd.f32 %v599, 1e-06
        %v602 = vadd.f32 %v600, 1e-06
        %v603 = vrsqrt.pop %v601
        %v604 = vmul.f32 %v603, %v601
        %v605 = vmul.f32 %v604, %v603
        %v606 = vmul.f32 0.5, %v605
        %v607 = vsub.f32 1.5, %v606
        %v608 = vmul.f32 %v603, %v607
        %v609 = vmul.f32 %v601, %v608
        %vm610 = vcmp.eq.f32.partialorder %v601, inf
        %v611 = vsel %vm610, %v601, %v609
        %vm612 = vcmp.eq.f32.partialorder %v601, 0.0
        %v613 = vand.u32 %v601, 2147483648
        %v614 = vsel %vm612, %v613, %v611
        %v615 = vrsqrt.pop %v602
        %v616 = vmul.f32 %v615, %v602
        %v617 = vmul.f32 %v616, %v615
        %v618 = vmul.f32 0.5, %v617
        %v619 = vsub.f32 1.5, %v618
        %v620 = vmul.f32 %v615, %v619
        %v621 = vmul.f32 %v602, %v620
        %vm622 = vcmp.eq.f32.partialorder %v602, inf
        %v623 = vsel %vm622, %v602, %v621
        %vm624 = vcmp.eq.f32.partialorder %v602, 0.0
        %v625 = vand.u32 %v602, 2147483648
        %v626 = vsel %vm624, %v625, %v623
        %s627 = scalar_lea.vmem %s319, 16 [#allocation8]
        %628 = vst.msk [vmem:[%s627] sm:$0xff] %vm486, %v614
        %629 = vst.msk [vmem:[%s627 + $0x8] sm:$0xff] %vm486, %v626
        %s630 = scalar_lea.vmem %s266, 32 [#allocation2]
        %v631 = vld [vmem:[%s630] sm:$0xff]
        %v632 = vld [vmem:[%s630 + $0x8] sm:$0xff]
        %s633 = scalar_lea.vmem %s276, 16 [#allocation5]
        %v634 = vld [vmem:[%s633 + $0x7] sm:$0x1]
        %s635 = scalar_lea.vmem %s286, 16 [#allocation7]
        %v636 = vld [vmem:[%s635] sm:$0x1]
        %v637 = vsel %vm346, %v634, 0.0
        %640 = vrot.lane.b32.xlu0 %v631, 1
        %v641 = vpop.permute.xlu0 %640
        %642 = vrot.lane.b32.xlu0 %v632, 1
        %v643 = vpop.permute.xlu0 %642
        %v646 = vsel %vm356, 0.0, %v641
        %v647 = vsel %vm356, 0.0, %v643
        %648 = vrot.lane.b32.xlu0 %v631, 127
        %v649 = vpop.permute.xlu0 %648
        %650 = vrot.lane.b32.xlu0 %v632, 127
        %v651 = vpop.permute.xlu0 %650
        %v654 = vsel %vm365, %v649, 0.0
        %v655 = vsel %vm365, %v651, 0.0
        %v656 = vadd.f32 %v646, %v654
        %v657 = vadd.f32 %v647, %v655
        %v658 = vadd.f32 %v631, %v631
        %v659 = vadd.f32 %v632, %v632
        %v660 = vadd.f32 %v656, %v658
        %v661 = vadd.f32 %v657, %v659
        %v662 = vsub.f32 %v654, %v646
        %v663 = vsub.f32 %v655, %v647
        %665 = vrot.lane.b32.xlu0 %v637, 1
        %v666 = vpop.permute.xlu0 %665
        %v668 = vsel %vm356, 0.0, %v666
        %669 = vrot.lane.b32.xlu0 %v637, 127
        %v670 = vpop.permute.xlu0 %669
        %v672 = vsel %vm365, %v670, 0.0
        %v673 = vadd.f32 %v668, %v672
        %v674 = vadd.f32 %v637, %v637
        %v675 = vadd.f32 %v673, %v674
        %v676 = vsub.f32 %v672, %v668
        %678 = vrot.lane.b32.xlu0 %v636, 1
        %v679 = vpop.permute.xlu0 %678
        %v681 = vsel %vm356, 0.0, %v679
        %682 = vrot.lane.b32.xlu0 %v636, 127
        %v683 = vpop.permute.xlu0 %682
        %v685 = vsel %vm365, %v683, 0.0
        %v686 = vadd.f32 %v681, %v685
        %v687 = vadd.f32 %v636, %v636
        %v688 = vadd.f32 %v686, %v687
        %v689 = vsub.f32 %v685, %v681
        %v692 = vrot.slane %v660, 7
        %v693 = vrot.slane %v661, 7
        %v694 = vsel %vm404, %v692, %v693
        %v697 = vsel %vm404, %v675, %v692
        %v700 = vrot.slane %v662, 7
        %v701 = vrot.slane %v663, 7
        %v702 = vsel %vm404, %v700, %v701
        %v705 = vsel %vm404, %v676, %v700
        %v706 = vrot.slane %v660, 1
        %v707 = vrot.slane %v661, 1
        %v708 = vsel %vm419, %v706, %v707
        %v712 = vrot.slane %v688, 1
        %v714 = vsel %vm419, %v707, %v712
        %v715 = vrot.slane %v662, 1
        %v716 = vrot.slane %v663, 1
        %v717 = vsel %vm419, %v715, %v716
        %v721 = vrot.slane %v689, 1
        %v723 = vsel %vm419, %v716, %v721
        %v724 = vsel %vm440, %v708, 0.0
        %v725 = vsel %vm441, %v714, 0.0
        %v726 = vsel %vm440, %v717, 0.0
        %v727 = vsel %vm441, %v723, 0.0
        %v728 = vsub.f32 %v724, %v697
        %v729 = vsub.f32 %v725, %v694
        %v730 = vadd.f32 %v705, %v726
        %v731 = vadd.f32 %v702, %v727
        %v732 = vadd.f32 %v662, %v662
        %v733 = vadd.f32 %v663, %v663
        %v734 = vadd.f32 %v730, %v732
        %v735 = vadd.f32 %v731, %v733
        %v736 = vmul.f32 %v728, %v728
        %v737 = vmul.f32 %v729, %v729
        %v738 = vmul.f32 %v734, %v734
        %v739 = vmul.f32 %v735, %v735
        %v740 = vadd.f32 %v736, %v738
        %v741 = vadd.f32 %v737, %v739
        %v742 = vadd.f32 %v740, 1e-06
        %v743 = vadd.f32 %v741, 1e-06
        %v744 = vrsqrt.pop %v742
        %v745 = vmul.f32 %v744, %v742
        %v746 = vmul.f32 %v745, %v744
        %v747 = vmul.f32 0.5, %v746
        %v748 = vsub.f32 1.5, %v747
        %v749 = vmul.f32 %v744, %v748
        %v750 = vmul.f32 %v742, %v749
        %vm751 = vcmp.eq.f32.partialorder %v742, inf
        %v752 = vsel %vm751, %v742, %v750
        %vm753 = vcmp.eq.f32.partialorder %v742, 0.0
        %v754 = vand.u32 %v742, 2147483648
        %v755 = vsel %vm753, %v754, %v752
        %v756 = vrsqrt.pop %v743
        %v757 = vmul.f32 %v756, %v743
        %v758 = vmul.f32 %v757, %v756
        %v759 = vmul.f32 0.5, %v758
        %v760 = vsub.f32 1.5, %v759
        %v761 = vmul.f32 %v756, %v760
        %v762 = vmul.f32 %v743, %v761
        %vm763 = vcmp.eq.f32.partialorder %v743, inf
        %v764 = vsel %vm763, %v743, %v762
        %vm765 = vcmp.eq.f32.partialorder %v743, 0.0
        %v766 = vand.u32 %v743, 2147483648
        %v767 = vsel %vm765, %v766, %v764
        %s768 = scalar_lea.vmem %s319, 32 [#allocation8]
        %769 = vst.msk [vmem:[%s768] sm:$0xff] %vm486, %v755
        %770 = vst.msk [vmem:[%s768 + $0x8] sm:$0xff] %vm486, %v767
        %s771 = sand.u32 %s145, 1
        %s772 = scalar_lea.sflag [#allocation4], %s771
        %s773 = sand.u32 %s145, 1
        %s774 = smul.addr %s773, 48
        %s775 = scalar_lea.vmem [#allocation8], %s774
        // Predicated region
        $region45: #{tpu_custom_call.1} parent=31 // pred_check
          %p776 = pneg %p155
        $region46: #{tpu_custom_call.1} parent=31 // pred_check_branch
          %778 = sbr.rel (%p776) target = $region48
        $region47: #{tpu_custom_call.1} parent=31 // pred_region
          %s779 = smul.u32 2, %s28
          %781 = vsyncadd %s772, 0
          %s782 = smul.addr %s27, 6
          %s783 = sadd.s32 %s779, %s782
          %s784 = smul.addr %s783, 8
          %s785 = scalar_lea.hbm %s3, %s784
          %s786 = sshll.u32 %s775, 4
          %s787 = int_to_ptr.vmem [resolvable:$true] %s786
          %s788 = sshll.u32 %s785, 4
          %s789 = int_to_ptr.hbm [resolvable:$true] %s788
          %794 = dma.vmem_to_hbm [thread:$0]  %s787, 768, %s789, %s772, 128, 128, 8
        $region48: #{tpu_custom_call.1} parent=31 // pred_fallthru
          _
      $region32: #{tpu_custom_call.1} parent=5 // pred_fallthru
        _
      %p795 = scmp.le.s32.totalorder 2, %s18
      // Predicated region
      $region49: #{tpu_custom_call.1} parent=5 // pred_check
        %p796 = pneg %p795
      $region50: #{tpu_custom_call.1} parent=5 // pred_check_branch
        %798 = sbr.rel (%p796) target = $region52
      $region51: #{tpu_custom_call.1} parent=5 // pred_region
        %s799 = ssub.s32 %s18, 2
        // Predicated region
        $region53: #{tpu_custom_call.1} parent=51 // pred_check
          %p800 = pneg %p161
        $region54: #{tpu_custom_call.1} parent=51 // pred_check_branch
          %802 = sbr.rel (%p800) target = $region56
        $region55: #{tpu_custom_call.1} parent=51 // pred_region
          %s803 = sand.u32 %s146, 1
          %s804 = scalar_lea.sflag [#allocation4], %s803
          %s805 = sand.u32 %s146, 1
          %s806 = smul.addr %s805, 48
          %s807 = scalar_lea.vmem [#allocation8], %s806
          %809 = dma.done %s804, 768
        $region56: #{tpu_custom_call.1} parent=51 // pred_fallthru
          _
      $region52: #{tpu_custom_call.1} parent=5 // pred_fallthru
        _
    $region6: #{tpu_custom_call.1} parent=1 // loop_footer
      %s22 = sadd.s32 1, %s18
    $region7: #{tpu_custom_call.1} parent=1 // loop_footer_branch
      %17 = sbr.rel target = $region3
    $region8: #{tpu_custom_call.1} parent=1 // loop_exit
      _
    %810 = vsyncpa [#allocation3], 1
    %s811 = scalar_lea.sflag [#allocation3], 1
    %812 = vsyncpa %s811, 1
    %813 = vsyncpa [#allocation6], 1
    %s814 = scalar_lea.sflag [#allocation6], 1
    %815 = vsyncpa %s814, 1
    %816 = vsyncpa [#allocation4], 1
    %s817 = scalar_lea.sflag [#allocation4], 1
    %818 = vsyncpa %s817, 1

</llo_original>
